<compile_context>
chip_gen: v5e
topology: v5e:2x2
jax: 0.10.0
libtpu: 0.0.40
codegen_flags: <defaults>
</compile_context>

<pallas_src>
import jax
import jax.numpy as jnp
from jax import lax
from jax.experimental import pallas as pl
from jax.experimental.pallas import tpu as pltpu

_D = 20  # feature size of the module (Linear(20, 20))


def fixed_hidden_mlp_kernel(x_ref, cpack_ref, out_ref):
    x = x_ref[...]                              # (B, 20) f32
    m1 = cpack_ref[0, 0:_D, :]                  # (20, 20) = W.T @ rand_weight (prefused)
    c1 = cpack_ref[0, _D:_D + 1, :]             # (1, 20)  = b @ rand_weight + 1 (prefused)
    wt = cpack_ref[1, 0:_D, :]                  # (20, 20) = W.T (pre-transposed)
    bb = cpack_ref[1, _D:_D + 1, :]             # (1, 20)  = b

    # relu(linear(X) @ rand_weight + 1) -- first linear folded into m1 / c1.
    h = jnp.maximum(jnp.dot(x, m1, preferred_element_type=jnp.float32) + c1, 0.0)
    # X = linear(X)
    h = jnp.dot(h, wt, preferred_element_type=jnp.float32) + bb      # (B, 20)

    # One lane-reduce feeds both sums: rows [0:B] -> sum(X), rows [B:2B] -> sum(|X|).
    b_rows = h.shape[0]
    hs = jnp.concatenate([h, jnp.abs(h)], axis=0)                    # (2B, 20)
    row = jnp.sum(hs, axis=-1, keepdims=True)                        # (2B, 1)
    if b_rows == 2:
        total_v = row[0:1, :] + row[1:2, :]                          # (1, 1) = sum(X)
        abs_v = row[2:3, :] + row[3:4, :]                            # (1, 1) = sum(|X|)
    else:
        total_v = jnp.sum(row[0:b_rows, :], axis=0, keepdims=True)
        abs_v = jnp.sum(row[b_rows:, :], axis=0, keepdims=True)

    # while X.abs().sum() > 1: X /= 2   -> closed form (exact in fp32):
    #   abs_sum <= 1                   -> k = 0
    #   abs_sum = m * 2^e, m in [1,2)  -> k = e (+1 if m != 1)
    bits = pltpu.bitcast(abs_v, jnp.int32)                           # exact bit pattern
    exp_f = (bits >> 23) & 0xFF                                      # biased exponent
    mant = bits & 0x7FFFFF                                           # mantissa bits
    k = (exp_f - 127) + (mant != 0).astype(jnp.int32)
    k = jnp.where(abs_v > 1.0, k, 0)
    k = jnp.clip(k, 0, 126)                  # assumes abs_sum < 2^127 (true at these scales)
    scale_v = pltpu.bitcast((127 - k) << 23, jnp.float32)            # (1,1) = 2^-k, exact

    # X.sum() after k halvings == sum(X) * 2^-k (power-of-two scaling is exact).
    out_ref[0] = jnp.sum(total_v * scale_v)   # (1,1) multiply -> scalar store to SMEM


def make_fixed_hidden_mlp(w, b, rand_weight):
    """Module init: fold & pack constants once, return a jitted forward(x)."""
    w = jnp.asarray(w, jnp.float32)
    b = jnp.asarray(b, jnp.float32)
    rw = jnp.asarray(rand_weight, jnp.float32)

    wt = w.T                                    # contraction-ready layout
    m1 = wt @ rw                                # fuse linear -> rand_weight matmul
    c1 = b @ rw + 1.0                           # fused bias (+1 from the relu arg)
    cpack = jnp.stack([
        jnp.concatenate([m1, c1[None, :]], axis=0),   # (21, 20)
        jnp.concatenate([wt, b[None, :]], axis=0),    # (21, 20)
    ]).astype(jnp.float32)                      # (2, 21, 20) -> one DMA per call
    cpack = jax.device_put(cpack)

    def forward(x):
        x = x.astype(jnp.float32)
        bsz, d = x.shape
        out = pl.pallas_call(
            fixed_hidden_mlp_kernel,
            out_shape=jax.ShapeDtypeStruct((1,), jnp.float32),
            in_specs=[
                pl.BlockSpec(memory_space=pltpu.MemorySpace.VMEM),
                pl.BlockSpec(memory_space=pltpu.MemorySpace.VMEM),
            ],
            out_specs=pl.BlockSpec(memory_space=pltpu.MemorySpace.SMEM),
            cost_estimate=pl.CostEstimate(
                flops=2 * 2 * bsz * d * d,            # two (B,D)x(D,D) MXU dots
                transcendentals=0,
                bytes_accessed=4 * (x.size + cpack.size + 1),
            ),
        )(x, cpack)
        return out[0]

    return jax.jit(forward)


if __name__ == "__main__":
    key = jax.random.PRNGKey(0)
    k_x, k_w, k_b, k_rw = jax.random.split(key, 4)

    # Module shapes: X (2, 20); Linear(20, 20) -> weight (20, 20), bias (20,);
    # rand_weight (20, 20) ~ U[0, 1) (fixed, non-trainable).
    x = jax.random.uniform(k_x, (2, 20), dtype=jnp.float32)
    w = jax.random.uniform(k_w, (20, 20), dtype=jnp.float32, minval=-0.2, maxval=0.2)
    b = jax.random.uniform(k_b, (20,), dtype=jnp.float32, minval=-0.2, maxval=0.2)
    rand_weight = jax.random.uniform(k_rw, (20, 20), dtype=jnp.float32)

    forward = make_fixed_hidden_mlp(w, b, rand_weight)   # constants folded once here
    result = forward(x)
    jax.block_until_ready(result)

    # Pure-JAX reference with the exact PyTorch forward (unfused matmuls,
    # elementwise halving loop).
    def ref(x, w, b, rw):
        h = x @ w.T + b
        h = jnp.maximum(h @ rw + 1.0, 0.0)
        h = h @ w.T + b
        h = lax.while_loop(lambda hh: jnp.sum(jnp.abs(hh)) > 1.0,
                           lambda hh: hh / 2.0, h)
        return jnp.sum(h)

    expected = ref(x, w, b, rand_weight)
    assert jnp.allclose(result, expected, rtol=1e-4, atol=1e-4), (result, expected)
    print("KERNEL_OK")
</pallas_src>

<mosaic_0001>
module attributes {stable_mosaic.version = 11 : i64} {
  func.func @fixed_hidden_mlp_kernel(%arg0: memref<2x20xf32, #tpu.memory_space<vmem>>, %arg1: memref<2x21x20xf32, #tpu.memory_space<vmem>>, %arg2: memref<1xf32, #tpu.memory_space<smem>>) attributes {dimension_semantics = [], scalar_prefetch = 0 : i64, scratch_operands = 0 : i64, tpu.core_type = #tpu.core_type<tc>} {
    %c0 = arith.constant 0 : index
    %c0_0 = arith.constant 0 : index
    %0 = vector.load %arg0[%c0, %c0_0] : memref<2x20xf32, #tpu.memory_space<vmem>>, vector<2x20xf32>
    %c0_1 = arith.constant 0 : index
    %c0_2 = arith.constant 0 : index
    %c0_3 = arith.constant 0 : index
    %1 = vector.load %arg1[%c0_1, %c0_2, %c0_3] : memref<2x21x20xf32, #tpu.memory_space<vmem>>, vector<1x20x20xf32>
    %2 = vector.shape_cast %1 : vector<1x20x20xf32> to vector<20x20xf32>
    %c0_4 = arith.constant 0 : index
    %c20 = arith.constant 20 : index
    %c0_5 = arith.constant 0 : index
    %3 = vector.load %arg1[%c0_4, %c20, %c0_5] : memref<2x21x20xf32, #tpu.memory_space<vmem>>, vector<1x1x20xf32>
    %4 = vector.shape_cast %3 : vector<1x1x20xf32> to vector<1x20xf32>
    %c1 = arith.constant 1 : index
    %c0_6 = arith.constant 0 : index
    %c0_7 = arith.constant 0 : index
    %5 = vector.load %arg1[%c1, %c0_6, %c0_7] : memref<2x21x20xf32, #tpu.memory_space<vmem>>, vector<1x20x20xf32>
    %6 = vector.shape_cast %5 : vector<1x20x20xf32> to vector<20x20xf32>
    %c1_8 = arith.constant 1 : index
    %c20_9 = arith.constant 20 : index
    %c0_10 = arith.constant 0 : index
    %7 = vector.load %arg1[%c1_8, %c20_9, %c0_10] : memref<2x21x20xf32, #tpu.memory_space<vmem>>, vector<1x1x20xf32>
    %8 = vector.shape_cast %7 : vector<1x1x20xf32> to vector<1x20xf32>
    %cst = arith.constant dense<0.000000e+00> : vector<2x20xf32>
    %9 = tpu.matmul %0, %2, %cst {dimension_numbers = #tpu.dot_dimension_numbers<[1], [0], [0], [1], [0, 0, 1, 1], [], []>} : vector<2x20xf32>, vector<20x20xf32>, vector<2x20xf32> -> vector<2x20xf32>
    %10 = vector.broadcast %4 : vector<1x20xf32> to vector<2x20xf32>
    %11 = arith.addf %9, %10 : vector<2x20xf32>
    %cst_11 = arith.constant 0.000000e+00 : f32
    %12 = vector.broadcast %cst_11 : f32 to vector<2x20xf32>
    %13 = arith.maximumf %11, %12 : vector<2x20xf32>
    %cst_12 = arith.constant dense<0.000000e+00> : vector<2x20xf32>
    %14 = tpu.matmul %13, %6, %cst_12 {dimension_numbers = #tpu.dot_dimension_numbers<[1], [0], [0], [1], [0, 0, 1, 1], [], []>} : vector<2x20xf32>, vector<20x20xf32>, vector<2x20xf32> -> vector<2x20xf32>
    %15 = vector.broadcast %8 : vector<1x20xf32> to vector<2x20xf32>
    %16 = arith.addf %14, %15 : vector<2x20xf32>
    %17 = math.absf %16 : vector<2x20xf32>
    %18 = tpu.concatenate %16, %17 in 0 : vector<2x20xf32>, vector<2x20xf32> -> vector<4x20xf32>
    %cst_13 = arith.constant dense<0.000000e+00> : vector<4xf32>
    %19 = vector.multi_reduction <add>, %18, %cst_13 [1] : vector<4x20xf32> to vector<4xf32>
    %20 = vector.shape_cast %19 : vector<4xf32> to vector<4x1xf32>
    %21 = vector.extract_strided_slice %20 {offsets = [0, 0], sizes = [1, 1], strides = [1, 1]} : vector<4x1xf32> to vector<1x1xf32>
    %22 = vector.extract_strided_slice %20 {offsets = [1, 0], sizes = [1, 1], strides = [1, 1]} : vector<4x1xf32> to vector<1x1xf32>
    %23 = arith.addf %21, %22 : vector<1x1xf32>
    %24 = vector.extract_strided_slice %20 {offsets = [2, 0], sizes = [1, 1], strides = [1, 1]} : vector<4x1xf32> to vector<1x1xf32>
    %25 = vector.extract_strided_slice %20 {offsets = [3, 0], sizes = [1, 1], strides = [1, 1]} : vector<4x1xf32> to vector<1x1xf32>
    %26 = arith.addf %24, %25 : vector<1x1xf32>
    %27 = tpu.bitcast %26 : vector<1x1xf32> -> vector<1x1xi32>
    %c23_i32 = arith.constant 23 : i32
    %28 = vector.broadcast %c23_i32 : i32 to vector<1x1xi32>
    %29 = arith.shrsi %27, %28 : vector<1x1xi32>
    %c255_i32 = arith.constant 255 : i32
    %30 = vector.broadcast %c255_i32 : i32 to vector<1x1xi32>
    %31 = arith.andi %29, %30 : vector<1x1xi32>
    %c8388607_i32 = arith.constant 8388607 : i32
    %32 = vector.broadcast %c8388607_i32 : i32 to vector<1x1xi32>
    %33 = arith.andi %27, %32 : vector<1x1xi32>
    %c127_i32 = arith.constant 127 : i32
    %34 = vector.broadcast %c127_i32 : i32 to vector<1x1xi32>
    %35 = arith.subi %31, %34 : vector<1x1xi32>
    %c0_i32 = arith.constant 0 : i32
    %36 = vector.broadcast %c0_i32 : i32 to vector<1x1xi32>
    %37 = arith.cmpi ne, %33, %36 : vector<1x1xi32>
    %38 = arith.extui %37 : vector<1x1xi1> to vector<1x1xi32>
    %39 = arith.addi %35, %38 : vector<1x1xi32>
    %cst_14 = arith.constant 1.000000e+00 : f32
    %40 = vector.broadcast %cst_14 : f32 to vector<1x1xf32>
    %41 = arith.cmpf ogt, %26, %40 : vector<1x1xf32>
    %c0_i32_15 = arith.constant 0 : i32
    %42 = vector.broadcast %c0_i32_15 : i32 to vector<1x1xi32>
    %43 = arith.select %41, %39, %42 : vector<1x1xi1>, vector<1x1xi32>
    %c0_i32_16 = arith.constant 0 : i32
    %c126_i32 = arith.constant 126 : i32
    %44 = vector.broadcast %c0_i32_16 : i32 to vector<1x1xi32>
    %45 = arith.maxsi %44, %43 : vector<1x1xi32>
    %46 = vector.broadcast %c126_i32 : i32 to vector<1x1xi32>
    %47 = arith.minsi %46, %45 : vector<1x1xi32>
    %c127_i32_17 = arith.constant 127 : i32
    %48 = vector.broadcast %c127_i32_17 : i32 to vector<1x1xi32>
    %49 = arith.subi %48, %47 : vector<1x1xi32>
    %c23_i32_18 = arith.constant 23 : i32
    %50 = vector.broadcast %c23_i32_18 : i32 to vector<1x1xi32>
    %51 = arith.shli %49, %50 : vector<1x1xi32>
    %52 = tpu.bitcast %51 : vector<1x1xi32> -> vector<1x1xf32>
    %53 = arith.mulf %23, %52 : vector<1x1xf32>
    %54 = vector.shape_cast %53 : vector<1x1xf32> to vector<1x1x1xf32>
    %cst_19 = arith.constant dense<0.000000e+00> : vector<1xf32>
    %55 = vector.multi_reduction <add>, %54, %cst_19 [1, 2] : vector<1x1x1xf32> to vector<1xf32>
    %56 = vector.shape_cast %55 : vector<1xf32> to vector<1x1x1xf32>
    %57 = vector.extract %56[0, 0, 0] : f32 from vector<1x1x1xf32>
    %c0_20 = arith.constant 0 : index
    %58 = memref.load %arg2[%c0_20] : memref<1xf32, #tpu.memory_space<smem>>
    memref.store %57, %arg2[%c0_20] : memref<1xf32, #tpu.memory_space<smem>>
    return
  }
}

</mosaic_0001>

<llo_original>
// kernel: forward.1
$region0: #{forward.1}
  #allocation0 [shape = 'u32[]', space=smem, size = 0x4, offset = 0x4, fixed_abs, tag = 'smem constant byte address 0x4 - core index']
  #allocation1 [shape = 'u32[72,128]{1,0:T(1,128)}', space=vmem, size = 0x9000, scoped, tag = 'internal scratch']
  %s0 = inlined_call_operand.hbm [shape: f32[2,20], index: 0, kind: input, shape index: {}]
  %s1 = inlined_call_operand.hbm [shape: f32[2,21,20], index: 1, kind: input, shape index: {}]
  %s2 = inlined_call_operand.hbm [shape: f32[1], index: 2, kind: output, shape index: {}]
  %s3 = sld [smem:[#allocation0]]
  $region26: #{forward.1} parent=0
    _
  %s5 = ssub.s32 1, %s3
  %s6 = scalar_select 0, %s5, %s3
  $region1: #{forward.1} parent=0
    #allocation2 [shape = 'u8[1024]{0}', space=vmem, size = 0x400, scoped, tag = 'input window, operand 0, single buffered']
    #allocation3 [shape = 's32[1]{0}', space=sflag, size = 0x4, scoped, tag = 'scoped memory for forward.1']
    #allocation4 [shape = 's32[1]{0}', space=sflag, size = 0x4, scoped, tag = 'scoped memory for forward.1']
    #allocation5 [shape = 'u8[24576]{0}', space=vmem, size = 0x6000, scoped, tag = 'input window, operand 1, single buffered']
    #allocation6 [shape = 's32[1]{0}', space=sflag, size = 0x4, scoped, tag = 'scoped memory for forward.1']
    #allocation7 [shape = 'u8[512]{0}', space=smem, size = 0x200, scoped, tag = 'output window, operand 0, single buffered']
    %7 = vsyncpa [#allocation3], 0
    %8 = vsyncpa [#allocation6], 0
    %9 = vsyncpa [#allocation4], 0
    // Predicated region
    $region2: #{forward.1} parent=1 // pred_check
      _
    $region3: #{forward.1} parent=1 // pred_check_branch
      %11 = sbr.rel (0) target = $region5
    $region4: #{forward.1} parent=1 // pred_region
      %13 = vsyncadd [#allocation3], 0
      %s15 = sshll.u32 %s0, 4
      %s16 = int_to_ptr.hbm [resolvable:$true] %s15
      %s17 = sshll.u32 [#allocation2], 4
      %s18 = int_to_ptr.vmem [resolvable:$true] %s17
      %20 = dma.hbm_to_vmem [thread:$0]  %s16, 32, %s18, [#allocation3]
    $region5: #{forward.1} parent=1 // pred_fallthru
      _
    // Predicated region
    $region6: #{forward.1} parent=1 // pred_check
      _
    $region7: #{forward.1} parent=1 // pred_check_branch
      %22 = sbr.rel (0) target = $region9
    $region8: #{forward.1} parent=1 // pred_region
      %24 = vsyncadd [#allocation6], 0
      %s25 = sshll.u32 %s1, 4
      %s26 = int_to_ptr.hbm [resolvable:$true] %s25
      %s27 = sshll.u32 [#allocation5], 4
      %s28 = int_to_ptr.vmem [resolvable:$true] %s27
      %33 = dma.hbm_to_vmem [thread:$0]  %s26, 768, %s28, [#allocation6], 128, 128, 8
    $region9: #{forward.1} parent=1 // pred_fallthru
      _
    // Predicated region
    $region10: #{forward.1} parent=1 // pred_check
      _
    $region11: #{forward.1} parent=1 // pred_check_branch
      %35 = sbr.rel (0) target = $region13
    $region12: #{forward.1} parent=1 // pred_region
      %37 = dma.done [#allocation3], 32
    $region13: #{forward.1} parent=1 // pred_fallthru
      _
    // Predicated region
    $region14: #{forward.1} parent=1 // pred_check
      _
    $region15: #{forward.1} parent=1 // pred_check_branch
      %39 = sbr.rel (0) target = $region17
    $region16: #{forward.1} parent=1 // pred_region
      %41 = dma.done [#allocation6], 768
    $region17: #{forward.1} parent=1 // pred_fallthru
      _
    %v42 = vld [vmem:[#allocation2] sm:$0x3]
    %v43 = vld [vmem:[#allocation5] sm:$0xff]
    %v44 = vld [vmem:[#allocation5 + $0x8] sm:$0xff]
    %v45 = vld [vmem:[#allocation5 + $0x10] sm:$0xf]
    %v46 = vld [vmem:[#allocation5 + $0x14] sm:$0x1]
    %s47 = scalar_lea.vmem [#allocation5], 24
    %v48 = vld [vmem:[%s47] sm:$0xff]
    %v49 = vld [vmem:[%s47 + $0x8] sm:$0xff]
    %v50 = vld [vmem:[%s47 + $0x10] sm:$0xf]
    %v51 = vld [vmem:[%s47 + $0x14] sm:$0x1]
    %v52 = vperm.slane %v46, 0
    %vm53 = vcmask 162816
    %v55 = vsel %vm53, %v42, 0
    %vm57 = vcmask 1043456
    %v59 = vsel %vm57, %v45, 0
    %61 = vmatpush.msra.mxu0 0.0
    %62 = vmatpush.msra.mxu0 0.0
    %63 = vmatpush.msra.mxu0 0.0
    %64 = vmatpush.msra.mxu0 0.0
    %65 = vmatpush.msra.mxu0 0.0
    %66 = vmatpush.msra.mxu0 0.0
    %67 = vmatpush.msra.mxu0 0.0
    %68 = vmatpush.msra.mxu0 0.0
    %69 = vmatpush.msra.mxu0 0.0
    %70 = vmatpush.msra.mxu0 0.0
    %71 = vmatpush.msra.mxu0 0.0
    %72 = vmatpush.msra.mxu0 0.0
    %73 = vmatpush.msra.mxu0 0.0
    %74 = vmatpush.msra.mxu0 %v59
    %75 = vmatpush.msra.mxu0 %v44
    %76 = vmatpush.msra.mxu0 %v43
    %77 = vmatmul.f32.gmra.mxu0 %v55
    %v78 = vpop.f32.mrf.mxu0
    %v79 = vadd.f32 %v52, %v78
    %80 = vdwg.mxu0
    %v81 = vmax.f32 %v79, 0.0
    %v82 = vperm.slane %v51, 0
    %v84 = vsel %vm53, %v81, 0
    %v87 = vsel %vm57, %v50, 0
    %89 = vmatpush.msra.mxu0 0.0
    %90 = vmatpush.msra.mxu0 0.0
    %91 = vmatpush.msra.mxu0 0.0
    %92 = vmatpush.msra.mxu0 0.0
    %93 = vmatpush.msra.mxu0 0.0
    %94 = vmatpush.msra.mxu0 0.0
    %95 = vmatpush.msra.mxu0 0.0
    %96 = vmatpush.msra.mxu0 0.0
    %97 = vmatpush.msra.mxu0 0.0
    %98 = vmatpush.msra.mxu0 0.0
    %99 = vmatpush.msra.mxu0 0.0
    %100 = vmatpush.msra.mxu0 0.0
    %101 = vmatpush.msra.mxu0 0.0
    %102 = vmatpush.msra.mxu0 %v87
    %103 = vmatpush.msra.mxu0 %v49
    %104 = vmatpush.msra.mxu0 %v48
    %105 = vmatmul.f32.gmra.mxu0 %v84
    %v106 = vpop.f32.mrf.mxu0
    %v107 = vadd.f32 %v82, %v106
    %108 = vdwg.mxu0
    %v109 = vand.u32 2147483647, %v107
    %v111 = vrot.slane %v109, 6
    %vm113 = vcmask 1041408
    %v114 = vsel %vm113, %v107, %v111
    %vm115 = vcmask 158720
    %v116 = vsel %vm115, %v114, 0.0
    %117 = vadd.xlane.f32.xlu0 %v116
    %v118 = vpop.xlane.xlu0 %117
    %v120 = vrot.slane %v118, 1
    %v122 = vadd.f32 %v118, %v120
    %v124 = vshra.s32 %v122, 23
    %v125 = vand.u32 %v124, 255
    %v126 = vand.u32 %v122, 8388607
    %v127 = vsub.s32 %v125, 127
    %vm128 = vcmp.ne.s32.totalorder %v126, 0
    %v129 = vsel %vm128, 1, 0
    %v130 = vadd.s32 %v127, %v129
    %vm131 = vcmp.gt.f32.partialorder %v122, 1.0
    %v132 = vsel %vm131, %v130, 0
    %vm133 = vcmp.gt.s32.totalorder %v132, 0
    %v134 = vsel %vm133, %v132, 0
    %vm135 = vcmp.lt.s32.totalorder %v134, 126
    %v136 = vsel %vm135, %v134, 126
    %v137 = vsub.s32 127, %v136
    %v138 = vshll.u32 %v137, 23
    %v139 = vrot.slane %v138, 2
    %v141 = vmul.f32 %v122, %v139
    %v142 = vadd.f32 %v141, 0.0
    %s143 = vtos %v142
    %s144 = scalar_lea.smem [#allocation7], 0
    %145 = sst [smem:[%s144]] %s143
    // Predicated region
    $region18: #{forward.1} parent=1 // pred_check
      _
    $region19: #{forward.1} parent=1 // pred_check_branch
      %147 = sbr.rel (0) target = $region21
    $region20: #{forward.1} parent=1 // pred_region
      %149 = vsyncadd [#allocation4], 0
      %s151 = sshll.u32 %s2, 4
      %s152 = int_to_ptr.hbm [resolvable:$true] %s151
      %154 = dma.smem_to_hbm [#allocation7], 16, %s152, [#allocation4]
    $region21: #{forward.1} parent=1 // pred_fallthru
      _
    // Predicated region
    $region22: #{forward.1} parent=1 // pred_check
      _
    $region23: #{forward.1} parent=1 // pred_check_branch
      %156 = sbr.rel (0) target = $region25
    $region24: #{forward.1} parent=1 // pred_region
      %158 = dma.done [#allocation4], 16
    $region25: #{forward.1} parent=1 // pred_fallthru
      _
    %159 = sfence
    %160 = vsyncpa [#allocation3], 1
    %161 = vsyncpa [#allocation6], 1
    %162 = vsyncpa [#allocation4], 1

</llo_original>
